<compile_context>
chip_gen: v7x
topology: tpu7x:2x2x1
jax: 0.10.0
libtpu: 0.0.40
codegen_flags: <defaults>
</compile_context>

<pallas_src>
import math

import jax
import jax.numpy as jnp
from jax.experimental import pallas as pl
from jax.experimental.pallas import tpu as pltpu


def attacker_kernel(x_ref, r_ref, o_ref):
    # x_ref: (TG, ROWS, 128), r_ref: (1, ROWS, 128) -> broadcast add + clamp.
    o_ref[...] = jnp.clip(x_ref[...] + r_ref[...], 0.0, 1.0)


def attacker_forward(x, r, *, groups_per_tile=128):
    """x: (N, C, H, W) float32, r: (1, C, H, W) float32 -> (N, C, H, W)."""
    N, C, H, W = x.shape
    P = C * H * W  # 784 for MNIST
    assert r.shape == (1, C, H, W)

    # Lane-dense packing: GROUP images -> ROWS rows of exactly 128 lanes.
    GROUP = 128 // math.gcd(P, 128)   # 8 images per lane-aligned group (P=784)
    ROWS = GROUP * P // 128           # 49 slab rows per group

    # Pad the batch up to a multiple of GROUP so N*P is a multiple of 128.
    pad = (-N) % GROUP
    if pad:
        x = jnp.concatenate([x, jnp.zeros((pad, C, H, W), x.dtype)], axis=0)
    Np = N + pad
    n_groups = Np // GROUP

    x_slab = x.reshape(n_groups, ROWS, 128)
    # r repeats every GROUP images -> materialize one group's worth once (~25 KB).
    r_slab = jnp.tile(r.reshape(1, P), (GROUP, 1)).reshape(1, ROWS, 128)

    tg = min(groups_per_tile, n_groups)
    grid = (pl.cdiv(n_groups, tg),)

    out_slab = pl.pallas_call(
        attacker_kernel,
        out_shape=jax.ShapeDtypeStruct((n_groups, ROWS, 128), x.dtype),
        grid=grid,
        in_specs=[
            # x: one tile of tg batch-groups; (ROWS, 128) trailing dims are
            # full-extent / lane-dense, so all stores are unmasked full vst.
            pl.BlockSpec((tg, ROWS, 128), lambda i: (i, 0, 0)),
            # r: single group's slab, broadcast across every grid step.
            pl.BlockSpec((1, ROWS, 128), lambda i: (0, 0, 0)),
        ],
        out_specs=pl.BlockSpec((tg, ROWS, 128), lambda i: (i, 0, 0)),
        compiler_params=pltpu.CompilerParams(
            dimension_semantics=("parallel",),
        ),
    )(x_slab, r_slab)

    out = out_slab.reshape(Np, C, H, W)
    return out[:N] if pad else out


if __name__ == "__main__":
    key = jax.random.PRNGKey(0)
    kx, _ = jax.random.split(key)

    # Small, MNIST-shaped inputs: batch=2, 1 channel, 28x28.
    N, C, H, W = 2, 1, 28, 28
    x = jax.random.uniform(kx, (N, C, H, W), dtype=jnp.float32)

    # Parameter init exactly as in the module: r = zeros(1, 1, 28, 28).
    r = jnp.zeros((1, C, H, W), dtype=jnp.float32)
    # (Shift r slightly so add+clamp is actually exercised; still deterministic.)
    r = r + 0.25

    out = attacker_forward(x, r)
    out = jax.block_until_ready(out)

    # Reference check in plain JAX.
    ref = jnp.clip(x + r, 0.0, 1.0)
    assert out.shape == (N, C, H, W)
    assert out.dtype == jnp.float32
    assert jnp.allclose(out, ref, atol=1e-6), "mismatch vs reference"

    print("KERNEL_OK")
</pallas_src>

<mosaic_0001>
module attributes {stable_mosaic.version = 11 : i64} {
  func.func @attacker_kernel(%arg0: i32, %arg1: memref<1x49x128xf32, #tpu.memory_space<vmem>>, %arg2: memref<1x49x128xf32, #tpu.memory_space<vmem>>, %arg3: memref<1x49x128xf32, #tpu.memory_space<vmem>>) attributes {dimension_semantics = [#tpu.dimension_semantics<parallel>], iteration_bounds = array<i64: 1>, scalar_prefetch = 0 : i64, scratch_operands = 0 : i64, tpu.core_type = #tpu.core_type<tc>, window_params = [{transform_indices = @transform_0, window_bounds = array<i64: 1, 49, 128>}, {pipeline_mode = #tpu.pipeline_mode<synchronous>, transform_indices = @transform_1, window_bounds = array<i64: 1, 49, 128>}, {transform_indices = @transform_2, window_bounds = array<i64: 1, 49, 128>}]} {
    %c0 = arith.constant 0 : index
    %c0_0 = arith.constant 0 : index
    %c0_1 = arith.constant 0 : index
    %0 = vector.load %arg1[%c0, %c0_0, %c0_1] : memref<1x49x128xf32, #tpu.memory_space<vmem>>, vector<1x49x128xf32>
    %c0_2 = arith.constant 0 : index
    %c0_3 = arith.constant 0 : index
    %c0_4 = arith.constant 0 : index
    %1 = vector.load %arg2[%c0_2, %c0_3, %c0_4] : memref<1x49x128xf32, #tpu.memory_space<vmem>>, vector<1x49x128xf32>
    %2 = arith.addf %0, %1 : vector<1x49x128xf32>
    %cst = arith.constant 0.000000e+00 : f32
    %cst_5 = arith.constant 1.000000e+00 : f32
    %3 = vector.broadcast %cst : f32 to vector<1x49x128xf32>
    %4 = arith.maximumf %3, %2 : vector<1x49x128xf32>
    %5 = vector.broadcast %cst_5 : f32 to vector<1x49x128xf32>
    %6 = arith.minimumf %5, %4 : vector<1x49x128xf32>
    %c0_6 = arith.constant 0 : index
    %c0_7 = arith.constant 0 : index
    %c0_8 = arith.constant 0 : index
    %7 = vector.load %arg3[%c0_6, %c0_7, %c0_8] : memref<1x49x128xf32, #tpu.memory_space<vmem>>, vector<1x49x128xf32>
    tpu.vector_store %arg3[%c0_6, %c0_7, %c0_8], %6 {strides = array<i32>} : memref<1x49x128xf32, #tpu.memory_space<vmem>>, vector<1x49x128xf32>,
    return
  }
  func.func @transform_0(%arg0: i32) -> (i32, i32, i32) {
    %c0_i32 = arith.constant 0 : i32
    %c0_i32_0 = arith.constant 0 : i32
    %c0_i32_1 = arith.constant 0 : i32
    return %arg0, %c0_i32, %c0_i32_0 : i32, i32, i32
  }
  func.func @transform_1(%arg0: i32) -> (i32, i32, i32) {
    %c0_i32 = arith.constant 0 : i32
    %c0_i32_0 = arith.constant 0 : i32
    %c0_i32_1 = arith.constant 0 : i32
    %c0_i32_2 = arith.constant 0 : i32
    return %c0_i32, %c0_i32_0, %c0_i32_1 : i32, i32, i32
  }
  func.func @transform_2(%arg0: i32) -> (i32, i32, i32) {
    %c0_i32 = arith.constant 0 : i32
    %c0_i32_0 = arith.constant 0 : i32
    %c0_i32_1 = arith.constant 0 : i32
    return %arg0, %c0_i32, %c0_i32_0 : i32, i32, i32
  }
}

</mosaic_0001>

<llo_original>
// kernel: tpu_custom_call.1
$region0: #{tpu_custom_call.1}
  #allocation0 [shape = 'u32[]', space=smem, size = 0x4, offset = 0x4, fixed_abs, tag = 'smem constant byte address 0x4 - core index']
  #allocation1 [shape = 'u32[144,128]{1,0:T(1,128)}', space=vmem, size = 0x12000, scoped, tag = 'internal scratch']
  %s0 = inlined_call_operand.vmem [shape: f32[1,49,128], index: 0, kind: input, shape index: {}]
  %s1 = inlined_call_operand.vmem [shape: f32[1,49,128], index: 1, kind: input, shape index: {}]
  %s2 = inlined_call_operand.vmem [shape: f32[1,49,128], index: 2, kind: output, shape index: {}]
  %s3 = sld [smem:[#allocation0]]
  $region18: #{tpu_custom_call.1} parent=0
    _
  %s5 = ssub.s32 1, %s3
  %s6 = scalar_select 0, %s5, %s3
  // Predicated region
  $region2: #{tpu_custom_call.1} parent=0 // pred_check
    _
  $region3: #{tpu_custom_call.1} parent=0 // pred_check_branch
    %8 = sbr.rel (0) target = $region5
  $region4: #{tpu_custom_call.1} parent=0 // pred_region
    _
  $region5: #{tpu_custom_call.1} parent=0 // pred_fallthru
    _
  // Predicated region
  $region6: #{tpu_custom_call.1} parent=0 // pred_check
    _
  $region7: #{tpu_custom_call.1} parent=0 // pred_check_branch
    %10 = sbr.rel (0) target = $region9
  $region8: #{tpu_custom_call.1} parent=0 // pred_region
    _
  $region9: #{tpu_custom_call.1} parent=0 // pred_fallthru
    _
  %v11 = vld [vmem:[%s0] sm:$0xff]
  %v12 = vld [vmem:[%s0 + $0x8] sm:$0xff]
  %v13 = vld [vmem:[%s0 + $0x10] sm:$0xff]
  %v14 = vld [vmem:[%s0 + $0x18] sm:$0xff]
  %v15 = vld [vmem:[%s0 + $0x20] sm:$0xff]
  %v16 = vld [vmem:[%s0 + $0x28] sm:$0xff]
  %v17 = vld [vmem:[%s0 + $0x30] sm:$0x1]
  %v18 = vld [vmem:[%s1] sm:$0xff]
  %v19 = vld [vmem:[%s1 + $0x8] sm:$0xff]
  %v20 = vld [vmem:[%s1 + $0x10] sm:$0xff]
  %v21 = vld [vmem:[%s1 + $0x18] sm:$0xff]
  %v22 = vld [vmem:[%s1 + $0x20] sm:$0xff]
  %v23 = vld [vmem:[%s1 + $0x28] sm:$0xff]
  %v24 = vld [vmem:[%s1 + $0x30] sm:$0x1]
  %v25 = vadd.f32 %v11, %v18
  %v26 = vadd.f32 %v12, %v19
  %v27 = vadd.f32 %v13, %v20
  %v28 = vadd.f32 %v14, %v21
  %v29 = vadd.f32 %v15, %v22
  %v30 = vadd.f32 %v16, %v23
  %v31 = vadd.f32 %v17, %v24
  %v32 = vmax.f32 %v25, 0.0
  %v33 = vmax.f32 %v26, 0.0
  %v34 = vmax.f32 %v27, 0.0
  %v35 = vmax.f32 %v28, 0.0
  %v36 = vmax.f32 %v29, 0.0
  %v37 = vmax.f32 %v30, 0.0
  %v38 = vmax.f32 %v31, 0.0
  %v39 = vmin.f32 %v32, 1.0
  %v40 = vmin.f32 %v33, 1.0
  %v41 = vmin.f32 %v34, 1.0
  %v42 = vmin.f32 %v35, 1.0
  %v43 = vmin.f32 %v36, 1.0
  %v44 = vmin.f32 %v37, 1.0
  %v45 = vmin.f32 %v38, 1.0
  %46 = vst [vmem:[%s2] sm:$0xff] %v39
  %47 = vst [vmem:[%s2 + $0x8] sm:$0xff] %v40
  %48 = vst [vmem:[%s2 + $0x10] sm:$0xff] %v41
  %49 = vst [vmem:[%s2 + $0x18] sm:$0xff] %v42
  %50 = vst [vmem:[%s2 + $0x20] sm:$0xff] %v43
  %51 = vst [vmem:[%s2 + $0x28] sm:$0xff] %v44
  %52 = vst [vmem:[%s2 + $0x30] sm:$0x1] %v45
  // Predicated region
  $region10: #{tpu_custom_call.1} parent=0 // pred_check
    _
  $region11: #{tpu_custom_call.1} parent=0 // pred_check_branch
    %54 = sbr.rel (0) target = $region13
  $region12: #{tpu_custom_call.1} parent=0 // pred_region
    _
  $region13: #{tpu_custom_call.1} parent=0 // pred_fallthru
    _
  // Predicated region
  $region14: #{tpu_custom_call.1} parent=0 // pred_check
    _
  $region15: #{tpu_custom_call.1} parent=0 // pred_check_branch
    %56 = sbr.rel (0) target = $region17
  $region16: #{tpu_custom_call.1} parent=0 // pred_region
    _
  $region17: #{tpu_custom_call.1} parent=0 // pred_fallthru
    _

</llo_original>
